<compile_context>
chip_gen: v7x
topology: tpu7x:2x2x1
jax: 0.10.0
libtpu: 0.0.40
codegen_flags: <defaults>
</compile_context>

<pallas_src>
import functools

import jax
import jax.numpy as jnp
from jax.experimental import pallas as pl
from jax.experimental.pallas import tpu as pltpu


def _round_up(x, m):
    return ((x + m - 1) // m) * m


def _stargmin_kernel(x_ref, o_ref, *, neg_inv_temp, compute_softmax):
    # In-kernel upcast: bf16 / int inputs are read at native width and widened
    # per block, halving HBM read traffic for 16-bit inputs.
    x = x_ref[...].astype(jnp.float32)                 # (block_b, C)
    C = x.shape[1]
    col = jax.lax.broadcasted_iota(jnp.int32, x.shape, 1)

    # Single cross-lane min over x, reused for argmin AND the softmax shift.
    xmin = jnp.min(x, axis=1, keepdims=True)

    # First-occurrence argmin as a one-hot (torch tie-break: compare on x).
    idx_cand = jnp.where(x == xmin, col, C)            # non-min lanes -> C
    amin = jnp.min(idx_cand, axis=1, keepdims=True)
    onehot = (col == amin).astype(jnp.float32)

    if compute_softmax:
        # softmax(-x/temp), numerically stable; -1/temp folded into one mul.
        # max(x * neg_inv_temp) == xmin * neg_inv_temp (monotone rounding).
        z = x * neg_inv_temp
        e = jnp.exp(z - xmin * neg_inv_temp)
        s = e * pl.reciprocal(jnp.sum(e, axis=1, keepdims=True), approx=True)
        out = (onehot - s) + s                         # same ordering as torch
    else:
        # Pruned path (v7x): the softmax terms cancel; store the one-hot.
        out = onehot

    o_ref[...] = out.astype(o_ref.dtype)


def _choose_block_b(B, C):
    """Row-block size: ~4 MiB per buffer (HBM roofline), capped at 1024 rows,
    and keeping >= ~8 grid steps so each of v7x's two TCs pipelines >= 4."""
    lane_padded_c = _round_up(max(C, 1), 128)          # physical lane footprint
    bytes_per_row = lane_padded_c * 4                  # f32 compute/out bytes
    rows_budget = max(8, ((4 << 20) // bytes_per_row) // 8 * 8)
    rows_for_steps = max(8, _round_up(pl.cdiv(B, 8), 8))
    # TODO(synk): for extremely large C (>~1M lanes) a C-tiled online
    # reduction would be needed to keep a single row block inside VMEM.
    return min(rows_budget, 1024, rows_for_steps)


def _default_compute_softmax():
    # On v7x the ~12 VPU ops/element of the (cancelling) softmax path exceed
    # the 4-VALU slot budget at 3.2 TB/s HBM, flipping the kernel to
    # compute-bound; prune it there.  On v5e/v6e it hides under HBM slack.
    try:
        kind = jax.devices()[0].device_kind.lower()
        return not ("v7" in kind or "7x" in kind)
    except Exception:
        return True


def stargmin(x, temp, compute_softmax=None):
    """x: (B, C).  Returns one_hot(argmin(x,1)) - softmax(-x/temp).detach()
    + softmax(-x/temp) == a (B, C) one-hot (to <= 1 ulp)."""
    B, C = x.shape
    if compute_softmax is None:
        compute_softmax = _default_compute_softmax()

    out_dtype = x.dtype if jnp.issubdtype(x.dtype, jnp.floating) else jnp.float32
    block_b = _choose_block_b(B, C)
    grid = (pl.cdiv(B, block_b),)  # ragged last block: OOB reads are garbage
                                   # (per-row math only), OOB writes dropped.

    kernel = functools.partial(
        _stargmin_kernel,
        neg_inv_temp=-1.0 / float(temp),
        compute_softmax=compute_softmax,
    )
    cost = pl.CostEstimate(
        flops=(12 if compute_softmax else 4) * B * C,
        transcendentals=(B * C) if compute_softmax else 0,
        bytes_accessed=B * C * (x.dtype.itemsize + jnp.dtype(out_dtype).itemsize),
    )

    return pl.pallas_call(
        kernel,
        out_shape=jax.ShapeDtypeStruct((B, C), out_dtype),
        grid_spec=pltpu.PrefetchScalarGridSpec(
            num_scalar_prefetch=0,
            grid=grid,
            # Full-extent last block dim: legal even when C % 128 != 0, so no
            # wrapper-side +inf column pad (and no output slice) is needed.
            in_specs=[pl.BlockSpec((block_b, C), lambda i: (i, 0))],
            out_specs=pl.BlockSpec((block_b, C), lambda i: (i, 0)),
        ),
        compiler_params=pltpu.CompilerParams(
            dimension_semantics=("parallel",),
            vmem_limit_bytes=48 * 1024 * 1024,
        ),
        cost_estimate=cost,
    )(x)


def stargmin_ref(x, temp):
    """Plain-JAX reference mirroring the PyTorch forward."""
    xf = x.astype(jnp.float32)
    s = jax.nn.softmax(-xf / temp, axis=1)
    onehot = jax.nn.one_hot(jnp.argmin(xf, axis=1), x.shape[1], dtype=jnp.float32)
    return (onehot - jax.lax.stop_gradient(s)) + s


if __name__ == "__main__":
    temp = 0.5

    # Primary case: (batch, classes) = (16, 32).
    x = jax.random.normal(jax.random.PRNGKey(0), (16, 32), dtype=jnp.float32)
    out = jax.block_until_ready(stargmin(x, temp))
    ref = stargmin_ref(x, temp)
    assert out.shape == x.shape and out.dtype == x.dtype
    assert jnp.allclose(out, ref, atol=1e-5)
    assert jnp.allclose(jnp.sum(out, axis=1), 1.0, atol=1e-5)
    assert jnp.array_equal(jnp.argmax(out, axis=1), jnp.argmin(x, axis=1))

    # Exercise both code paths (full PyTorch-parity expression and the pruned
    # v7x path) on a ragged shape (B % block_b != 0, C % 128 != 0): no pads,
    # no output slice, results must still match.
    x2 = jax.random.normal(jax.random.PRNGKey(1), (13, 37), dtype=jnp.float32)
    ref2 = stargmin_ref(x2, temp)
    for cs in (True, False):
        out2 = jax.block_until_ready(stargmin(x2, temp, compute_softmax=cs))
        assert out2.shape == x2.shape
        assert jnp.allclose(out2, ref2, atol=1e-5)
        assert jnp.array_equal(jnp.argmax(out2, axis=1), jnp.argmin(x2, axis=1))

    print("KERNEL_OK")
</pallas_src>

<mosaic_0001>
module attributes {stable_mosaic.version = 11 : i64} {
  func.func @_stargmin_kernel(%arg0: i32, %arg1: memref<8x32xf32, #tpu.memory_space<vmem>>, %arg2: memref<8x32xf32, #tpu.memory_space<vmem>>) attributes {dimension_semantics = [#tpu.dimension_semantics<parallel>], iteration_bounds = array<i64: 2>, scalar_prefetch = 0 : i64, scratch_operands = 0 : i64, tpu.core_type = #tpu.core_type<tc>, window_params = [{transform_indices = @transform_0, window_bounds = array<i64: 8, 32>}, {transform_indices = @transform_1, window_bounds = array<i64: 8, 32>}]} {
    %c0 = arith.constant 0 : index
    %c0_0 = arith.constant 0 : index
    %0 = vector.load %arg1[%c0, %c0_0] : memref<8x32xf32, #tpu.memory_space<vmem>>, vector<8x32xf32>
    %1 = tpu.iota {dimensions = array<i32: 1>} : vector<8x32xi32>
    %cst = arith.constant dense<0x7F800000> : vector<8xf32>
    %2 = vector.multi_reduction <minimumf>, %0, %cst [1] : vector<8x32xf32> to vector<8xf32>
    %3 = vector.shape_cast %2 : vector<8xf32> to vector<8x1xf32>
    %4 = vector.broadcast %3 : vector<8x1xf32> to vector<8x32xf32>
    %5 = arith.cmpf oeq, %0, %4 : vector<8x32xf32>
    %c32_i32 = arith.constant 32 : i32
    %6 = vector.broadcast %c32_i32 : i32 to vector<8x32xi32>
    %7 = arith.select %5, %1, %6 : vector<8x32xi1>, vector<8x32xi32>
    %cst_1 = arith.constant dense<2147483647> : vector<8xi32>
    %8 = vector.multi_reduction <minsi>, %7, %cst_1 [1] : vector<8x32xi32> to vector<8xi32>
    %9 = vector.shape_cast %8 : vector<8xi32> to vector<8x1xi32>
    %10 = vector.broadcast %9 : vector<8x1xi32> to vector<8x32xi32>
    %11 = arith.cmpi eq, %1, %10 : vector<8x32xi32>
    %12 = arith.extui %11 : vector<8x32xi1> to vector<8x32xi32>
    %13 = arith.sitofp %12 : vector<8x32xi32> to vector<8x32xf32>
    %cst_2 = arith.constant -2.000000e+00 : f32
    %14 = vector.broadcast %cst_2 : f32 to vector<8x32xf32>
    %15 = arith.mulf %0, %14 : vector<8x32xf32>
    %cst_3 = arith.constant -2.000000e+00 : f32
    %16 = vector.broadcast %cst_3 : f32 to vector<8x1xf32>
    %17 = arith.mulf %3, %16 : vector<8x1xf32>
    %18 = vector.broadcast %17 : vector<8x1xf32> to vector<8x32xf32>
    %19 = arith.subf %15, %18 : vector<8x32xf32>
    %20 = math.exp %19 : vector<8x32xf32>
    %cst_4 = arith.constant dense<0.000000e+00> : vector<8xf32>
    %21 = vector.multi_reduction <add>, %20, %cst_4 [1] : vector<8x32xf32> to vector<8xf32>
    %22 = vector.shape_cast %21 : vector<8xf32> to vector<8x1xf32>
    %23 = tpu.reciprocal %22 {approx = true} : vector<8x1xf32> -> vector<8x1xf32>
    %24 = vector.broadcast %23 : vector<8x1xf32> to vector<8x32xf32>
    %25 = arith.mulf %20, %24 : vector<8x32xf32>
    %26 = arith.subf %13, %25 : vector<8x32xf32>
    %27 = arith.addf %26, %25 : vector<8x32xf32>
    %c0_5 = arith.constant 0 : index
    %c0_6 = arith.constant 0 : index
    %28 = vector.load %arg2[%c0_5, %c0_6] : memref<8x32xf32, #tpu.memory_space<vmem>>, vector<8x32xf32>
    tpu.vector_store %arg2[%c0_5, %c0_6], %27 {strides = array<i32>} : memref<8x32xf32, #tpu.memory_space<vmem>>, vector<8x32xf32>,
    return
  }
  func.func @transform_0(%arg0: i32) -> (i32, i32) {
    %c0_i32 = arith.constant 0 : i32
    %c0_i32_0 = arith.constant 0 : i32
    return %arg0, %c0_i32 : i32, i32
  }
  func.func @transform_1(%arg0: i32) -> (i32, i32) {
    %c0_i32 = arith.constant 0 : i32
    %c0_i32_0 = arith.constant 0 : i32
    return %arg0, %c0_i32 : i32, i32
  }
}

</mosaic_0001>

<llo_original>
// kernel: tpu_custom_call.1
$region0: #{tpu_custom_call.1}
  #allocation0 [shape = 'u32[]', space=smem, size = 0x4, offset = 0x4, fixed_abs, tag = 'smem constant byte address 0x4 - core index']
  #allocation1 [shape = 'u32[144,128]{1,0:T(1,128)}', space=vmem, size = 0x12000, scoped, tag = 'internal scratch']
  %s0 = inlined_call_operand.hbm [shape: f32[16,32], index: 0, kind: input, shape index: {}]
  %s1 = inlined_call_operand.hbm [shape: f32[16,32], index: 1, kind: output, shape index: {}]
  %s2 = sld [smem:[#allocation0]]
  $region41: #{tpu_custom_call.1} parent=0
    _
  %s4 = ssub.s32 1, %s2
  %s5 = scalar_select 0, %s4, %s2
  $region1: #{tpu_custom_call.1} parent=0
    #allocation2 [shape = 'u8[8192]{0}', space=vmem, size = 0x2000, scoped, tag = 'input window, operand 0']
    #allocation3 [shape = 's32[2]{0}', space=sflag, size = 0x8, scoped, tag = 'scoped memory for tpu_custom_call.1']
    #allocation4 [shape = 's32[2]{0}', space=sflag, size = 0x8, scoped, tag = 'scoped memory for tpu_custom_call.1']
    #allocation5 [shape = 'u8[8192]{0}', space=vmem, size = 0x2000, scoped, tag = 'output window, operand 0']
    %6 = vsyncpa [#allocation3], 0
    %s7 = scalar_lea.sflag [#allocation3], 1
    %8 = vsyncpa %s7, 0
    %9 = vsyncpa [#allocation4], 0
    %s10 = scalar_lea.sflag [#allocation4], 1
    %11 = vsyncpa %s10, 0
    loop: start=0, step=1, limit=4
    $region2: #{tpu_custom_call.1} parent=1 // loop_pre_header
      _
    $region3: #{tpu_custom_call.1} parent=1 // loop_header
      %s13 = sphi 0, %s17
      %p14 = scmp.ge.s32.totalorder %s13, 4
      %s23 = sphi 0, %s25
      %s26 = sphi 0, %s23
      %s27 = sphi 0, %s26
      %s43 = sphi 0, %s27
      %s49 = sphi 0, %s51
      %s52 = sphi 0, %s49
      %s53 = sphi 0, %s52
      %s69 = sphi 0, %s53
    $region4: #{tpu_custom_call.1} parent=1 // loop_header_branch
      %16 = sbr.rel (%p14) target = $region8
    $region5: #{tpu_custom_call.1} parent=1 // loop_body
      %s18 = ssub.s32 %s13, 1
      %s19 = ssub.s32 %s13, 2
      %s20 = sadd.s32 %s13, 1
      %s21 = ssub.s32 %s13, %s20
      %p22 = scmp.eq.s32.totalorder %s21, 0
      %s24 = sadd.s32 %s23, 1
      %s25 = scalar_select %p22, %s23, %s24
      %p28 = pneg %p22
      %p29 = scmp.eq.s32.totalorder %s13, 1
      %p30 = por %p28, %p29
      %p31 = scmp.ne.s32.totalorder %s23, %s26
      %p32 = scmp.eq.s32.totalorder %s13, 0
      %p33 = por %p31, %p32
      %p34 = scmp.ne.s32.totalorder %s23, %s26
      %p35 = scmp.eq.s32.totalorder %s18, 1
      %p36 = por %p34, %p35
      %p37 = scmp.ne.s32.totalorder %s26, %s27
      %p38 = scmp.eq.s32.totalorder %s18, 0
      %p39 = por %p37, %p38
      %p40 = scmp.ne.s32.totalorder %s26, %s27
      %p41 = scmp.eq.s32.totalorder %s19, 1
      %p42 = por %p40, %p41
      %p44 = scmp.ne.s32.totalorder %s27, %s43
      %p45 = scmp.eq.s32.totalorder %s19, 0
      %p46 = por %p44, %p45
      %s47 = ssub.s32 %s13, %s20
      %p48 = scmp.eq.s32.totalorder %s47, 0
      %s50 = sadd.s32 %s49, 1
      %s51 = scalar_select %p48, %s49, %s50
      %p54 = pneg %p48
      %p55 = scmp.eq.s32.totalorder %s13, 1
      %p56 = por %p54, %p55
      %p57 = scmp.ne.s32.totalorder %s49, %s52
      %p58 = scmp.eq.s32.totalorder %s13, 0
      %p59 = por %p57, %p58
      %p60 = scmp.ne.s32.totalorder %s49, %s52
      %p61 = scmp.eq.s32.totalorder %s18, 1
      %p62 = por %p60, %p61
      %p63 = scmp.ne.s32.totalorder %s52, %s53
      %p64 = scmp.eq.s32.totalorder %s18, 0
      %p65 = por %p63, %p64
      %p66 = scmp.ne.s32.totalorder %s52, %s53
      %p67 = scmp.eq.s32.totalorder %s19, 1
      %p68 = por %p66, %p67
      %p70 = scmp.ne.s32.totalorder %s53, %s69
      %p71 = scmp.eq.s32.totalorder %s19, 0
      %p72 = por %p70, %p71
      %p73 = scmp.le.s32.totalorder 1, %s13
      %p74 = scmp.lt.s32.totalorder %s13, 3
      %p75 = pnand %p73, %p74
      %p76 = pneg %p75
      // Predicated region
      $region9: #{tpu_custom_call.1} parent=5 // pred_check
        _
      $region10: #{tpu_custom_call.1} parent=5 // pred_check_branch
        %78 = sbr.rel (%p75) target = $region12
      $region11: #{tpu_custom_call.1} parent=5 // pred_region
        %s79 = ssub.s32 %s13, 1
      $region12: #{tpu_custom_call.1} parent=5 // pred_fallthru
        _
      %p80 = scmp.lt.s32.totalorder %s13, 2
      // Predicated region
      $region13: #{tpu_custom_call.1} parent=5 // pred_check
        %p81 = pneg %p80
      $region14: #{tpu_custom_call.1} parent=5 // pred_check_branch
        %83 = sbr.rel (%p81) target = $region16
      $region15: #{tpu_custom_call.1} parent=5 // pred_region
        // Predicated region
        $region17: #{tpu_custom_call.1} parent=15 // pred_check
          %p84 = pneg %p33
        $region18: #{tpu_custom_call.1} parent=15 // pred_check_branch
          %86 = sbr.rel (%p84) target = $region20
        $region19: #{tpu_custom_call.1} parent=15 // pred_region
          %s87 = sand.u32 %s23, 1
          %s88 = scalar_lea.sflag [#allocation3], %s87
          %s89 = sand.u32 %s23, 1
          %s90 = smul.addr %s89, 8
          %s91 = scalar_lea.vmem [#allocation2], %s90
          %s93 = ssub.s32 128, 128
          %94 = vsyncadd %s88, %s93
          %s95 = smul.addr %s13, 128
          %s96 = scalar_lea.hbm %s0, %s95
          %s98 = sshll.u32 %s91, 4
          %s99 = int_to_ptr.vmem [resolvable:$true] %s98
          %101 = dma.hbm_to_vmem [thread:$0]  %s96, 128, %s99, %s88
        $region20: #{tpu_custom_call.1} parent=15 // pred_fallthru
          _
      $region16: #{tpu_custom_call.1} parent=5 // pred_fallthru
        _
      %p102 = scmp.le.s32.totalorder 1, %s13
      %p103 = scmp.lt.s32.totalorder %s13, 3
      %p104 = pnand %p102, %p103
      %p105 = pneg %p104
      // Predicated region
      $region21: #{tpu_custom_call.1} parent=5 // pred_check
        _
      $region22: #{tpu_custom_call.1} parent=5 // pred_check_branch
        %107 = sbr.rel (%p104) target = $region24
      $region23: #{tpu_custom_call.1} parent=5 // pred_region
        %s108 = ssub.s32 %s13, 1
        %s109 = sand.u32 %s26, 1
        %s110 = scalar_lea.sflag [#allocation3], %s109
        %s111 = sand.u32 %s26, 1
        %s112 = smul.addr %s111, 8
        %s113 = scalar_lea.vmem [#allocation2], %s112
        // Predicated region
        $region25: #{tpu_custom_call.1} parent=23 // pred_check
          %p114 = pneg %p39
        $region26: #{tpu_custom_call.1} parent=23 // pred_check_branch
          %116 = sbr.rel (%p114) target = $region28
        $region27: #{tpu_custom_call.1} parent=23 // pred_region
          %117 = dma.done %s110, 128
        $region28: #{tpu_custom_call.1} parent=23 // pred_fallthru
          _
        %s118 = sand.u32 %s26, 1
        %s119 = scalar_lea.sflag [#allocation3], %s118
        %s120 = sand.u32 %s26, 1
        %s121 = smul.addr %s120, 8
        %s122 = scalar_lea.vmem [#allocation2], %s121
        %p123 = pneg %p39
        %p124 = pneg %p36
        %p125 = pneg %p65
        %p126 = pneg %p62
        %s127 = sand.u32 %s52, 1
        %s128 = scalar_lea.sflag [#allocation4], %s127
        %s129 = sand.u32 %s52, 1
        %s130 = smul.addr %s129, 8
        %s131 = scalar_lea.vmem [#allocation5], %s130
        %v132 = vld [vmem:[%s113] sm:$0xff]
        %v133 = vlaneseq
        %v134 = vand.u32 %v133, 127
        %vm135 = vcmask 261120
        %v136 = vsel %vm135, %v132, inf
        %137 = vmin.xlane.f32.xlu0 %v136
        %v138 = vpop.xlane.xlu0 %137
        %vm139 = vcmp.eq.f32.partialorder %v132, %v138
        %v140 = vsel %vm139, %v134, 32
        %v141 = vsel %vm135, %v140, 2147483647
        %v142 = vand.u32 %v141, 65535
        %v143 = vshra.s32 %v141, 16
        %v144 = vcvt.s32.f32 %v142
        %v145 = vcvt.s32.f32 %v143
        %146 = vmin.xlane.f32.xlu0 %v145
        %v147 = vpop.xlane.xlu0 %146
        %vm148 = vcmp.eq.f32.partialorder %v145, %v147
        %v149 = vsel %vm148, %v144, inf
        %150 = vmin.xlane.f32.xlu0 %v149
        %v151 = vpop.xlane.xlu0 %150
        %v152 = vcvt.f32.s32 %v151
        %v153 = vcvt.f32.s32 %v147
        %v154 = vshll.u32 %v153, 16
        %v155 = vadd.s32 %v154, %v152
        %vm156 = vcmp.eq.s32.totalorder %v134, %v155
        %v157 = vsel %vm156, 1, 0
        %v158 = vcvt.s32.f32 %v157
        %v159 = vmul.f32 %v132, -2.0
        %v160 = vmul.f32 %v138, -2.0
        %v161 = vsub.f32 %v159, %v160
        %v162 = vmul.f32 %v161, 1.442695
        %v163 = vpow.pop %v162
        %v164 = vsel %vm135, %v163, 0.0
        %165 = vadd.xlane.f32.xlu0 %v164
        %v166 = vpop.xlane.xlu0 %165
        %v167 = vrcp.pop %v166
        %v168 = vmul.f32 %v163, %v167
        %v169 = vsub.f32 %v158, %v168
        %v170 = vadd.f32 %v169, %v168
        %171 = vst.msk [vmem:[%s131] sm:$0xff] %vm135, %v170
        %s172 = sand.u32 %s52, 1
        %s173 = scalar_lea.sflag [#allocation4], %s172
        %s174 = sand.u32 %s52, 1
        %s175 = smul.addr %s174, 8
        %s176 = scalar_lea.vmem [#allocation5], %s175
        // Predicated region
        $region29: #{tpu_custom_call.1} parent=23 // pred_check
          %p177 = pneg %p62
        $region30: #{tpu_custom_call.1} parent=23 // pred_check_branch
          %179 = sbr.rel (%p177) target = $region32
        $region31: #{tpu_custom_call.1} parent=23 // pred_region
          %s181 = ssub.s32 128, 128
          %182 = vsyncadd %s173, %s181
          %s183 = smul.addr %s18, 128
          %s184 = scalar_lea.hbm %s1, %s183
          %s186 = sshll.u32 %s176, 4
          %s187 = int_to_ptr.vmem [resolvable:$true] %s186
          %189 = dma.vmem_to_hbm [thread:$0]  %s187, 128, %s184, %s173
        $region32: #{tpu_custom_call.1} parent=23 // pred_fallthru
          _
      $region24: #{tpu_custom_call.1} parent=5 // pred_fallthru
        _
      %p190 = scmp.le.s32.totalorder 2, %s13
      // Predicated region
      $region33: #{tpu_custom_call.1} parent=5 // pred_check
        %p191 = pneg %p190
      $region34: #{tpu_custom_call.1} parent=5 // pred_check_branch
        %193 = sbr.rel (%p191) target = $region36
      $region35: #{tpu_custom_call.1} parent=5 // pred_region
        %s194 = ssub.s32 %s13, 2
        // Predicated region
        $region37: #{tpu_custom_call.1} parent=35 // pred_check
          %p195 = pneg %p68
        $region38: #{tpu_custom_call.1} parent=35 // pred_check_branch
          %197 = sbr.rel (%p195) target = $region40
        $region39: #{tpu_custom_call.1} parent=35 // pred_region
          %s198 = sand.u32 %s53, 1
          %s199 = scalar_lea.sflag [#allocation4], %s198
          %s200 = sand.u32 %s53, 1
          %s201 = smul.addr %s200, 8
          %s202 = scalar_lea.vmem [#allocation5], %s201
          %203 = dma.done %s199, 128
        $region40: #{tpu_custom_call.1} parent=35 // pred_fallthru
          _
      $region36: #{tpu_custom_call.1} parent=5 // pred_fallthru
        _
    $region6: #{tpu_custom_call.1} parent=1 // loop_footer
      %s17 = sadd.s32 1, %s13
    $region7: #{tpu_custom_call.1} parent=1 // loop_footer_branch
      %12 = sbr.rel target = $region3
    $region8: #{tpu_custom_call.1} parent=1 // loop_exit
      _
    %204 = vsyncpa [#allocation3], 1
    %s205 = scalar_lea.sflag [#allocation3], 1
    %206 = vsyncpa %s205, 1
    %207 = vsyncpa [#allocation4], 1
    %s208 = scalar_lea.sflag [#allocation4], 1
    %209 = vsyncpa %s208, 1

</llo_original>
